<compile_context>
chip_gen: v6e
topology: v6e:2x2x1
jax: 0.10.0
libtpu: 0.0.40
codegen_flags: <defaults>
</compile_context>

<pallas_src>
import functools

import jax
import jax.numpy as jnp
from jax.experimental import pallas as pl
from jax.experimental.pallas import tpu as pltpu

# ---- module constants (small shapes consistent with the forward contract) ----
N_HIST = 8         # n_hist
N_CAND = 8         # n_cand
D = 8              # input dim d
N_HIST_OUT = 1     # n_hist_out
N_ACQF = 2         # n_acqf_params
H = 32             # hidden width of body encoders
F = 32             # af_body.output_dim (== af_head input_dim)
O = 1              # output_dim of the acquisition function

# padded feature width shared by the fused hist/cand inputs (8-aligned)
KPAD = ((max(D + N_HIST_OUT, D + N_ACQF) + 7) // 8) * 8    # = 16
KF = H + H + KPAD                                          # = 80  (fused feature K)
PW = 128                                                   # param-slab / output lane width

# ---- parameter-slab row offsets (all static) ----
OFF_L1 = 0                     # [W1_full | Wc_full]          (KPAD, 2H)
OFF_W2 = OFF_L1 + KPAD         # W2                           (H, H)
OFF_WF = OFF_W2 + H            # [Wfc ; Wfg ; Wp_full]        (KF, F)
OFF_WH1 = OFF_WF + KF          # Wh1                          (F, H)
OFF_WH2 = OFF_WH1 + F          # Wh2 padded to 128 lanes      (H, PW)
OFF_B = OFF_WH2 + H            # biases (8 rows)
P_ROWS = OFF_B + 8             # total rows = 200


def _af_kernel(data_ref, p_ref, out_ref, *, hr, cr):
    """One batch-tile: hr = BT*n_hist history rows, cr = BT*n_cand candidate rows."""
    # ---- static unpack of the packed parameter slab (zero runtime cost) ----
    w_l1 = p_ref[OFF_L1:OFF_L1 + KPAD, 0:2 * H]     # [W1x;W1y;0 | Wc;0]     (KPAD, 2H)
    w2 = p_ref[OFF_W2:OFF_W2 + H, 0:H]              # (H, H)
    w_feat = p_ref[OFF_WF:OFF_WF + KF, 0:F]         # [Wfc ; Wfg ; Wp_full]  (KF, F)
    wh1 = p_ref[OFF_WH1:OFF_WH1 + F, 0:H]           # (F, H)
    wh2 = p_ref[OFF_WH2:OFF_WH2 + H, :]             # (H, PW), col 0 = Wh2

    b1 = p_ref[OFF_B + 0:OFF_B + 1, 0:H]
    b2 = p_ref[OFF_B + 1:OFF_B + 2, 0:H]
    bc = p_ref[OFF_B + 2:OFF_B + 3, 0:H]
    bf = p_ref[OFF_B + 3:OFF_B + 4, 0:F]
    bh1 = p_ref[OFF_B + 4:OFF_B + 5, 0:H]
    bh2 = p_ref[OFF_B + 5:OFF_B + 6, :]             # (1, PW), col 0 = bh2

    # ---- static unpack of the fused per-tile data slab ----
    xin = data_ref[0:hr + cr, 0:KPAD]               # [hist ; cand] rows
    cand = data_ref[hr:hr + cr, 0:KPAD]             # [x_cand ; acqf ; 0]
    pmat = data_ref[hr + cr:hr + 2 * cr, 0:hr]      # mask/count & expand, block-diag

    # ---- layer 1: hist + cand encoders fused into one N-wide matmul ----
    l1 = jnp.dot(xin, w_l1, preferred_element_type=jnp.float32)       # (hr+cr, 2H)
    h1 = jnp.maximum(l1[0:hr, 0:H] + b1, 0.0)                         # (hr, H)
    ce = jnp.maximum(l1[hr:hr + cr, H:2 * H] + bc, 0.0)               # (cr, H)

    # ---- layer 2 of the history encoder ----
    h2 = jnp.maximum(jnp.dot(h1, w2, preferred_element_type=jnp.float32) + b2, 0.0)

    # ---- masked mean pooling + per-candidate expansion: one exact matmul ----
    pooled_exp = jnp.dot(pmat, h2, preferred_element_type=jnp.float32)  # (cr, H)

    # ---- feature layer: K-concatenated single matmul ----
    fcat = jnp.concatenate([ce, pooled_exp, cand], axis=1)              # (cr, KF)
    feat = jnp.maximum(
        jnp.dot(fcat, w_feat, preferred_element_type=jnp.float32) + bf, 0.0)

    # ---- head MLP (final layer padded to 128 lanes -> unmasked store) ----
    hh = jnp.maximum(
        jnp.dot(feat, wh1, preferred_element_type=jnp.float32) + bh1, 0.0)
    out = jnp.dot(hh, wh2, preferred_element_type=jnp.float32) + bh2     # (cr, PW)
    out_ref[...] = out.astype(out_ref.dtype)


def two_part_acqf_net(x_hist, y_hist, x_cand, acqf_params, hist_mask, params,
                      cand_mask=None, *, batch_tile=2):
    """Full forward pass; batch is tiled into `batch_tile`-sized grid steps."""
    del cand_mask  # TODO(synk): accepted by the contract, unused by body/head.
    f32 = jnp.float32
    (w1x, w1y, b1, w2, b2, wc, bc, wfc, wfg, wfp, bf, wh1, bh1, wh2, bh2) = params

    # ---- shape checks (silent padding/truncation would be a correctness bug) ----
    B = x_hist.shape[0]
    assert x_hist.shape == (B, N_HIST, D), x_hist.shape
    assert y_hist.shape == (B, N_HIST, N_HIST_OUT), y_hist.shape
    assert x_cand.shape == (B, N_CAND, D), x_cand.shape
    assert acqf_params.shape == (B, N_CAND, N_ACQF), acqf_params.shape
    assert hist_mask.shape == (B, N_HIST, 1), hist_mask.shape
    assert B % batch_tile == 0, (B, batch_tile)

    bt = batch_tile
    n_tiles = B // bt
    HR, CR = bt * N_HIST, bt * N_CAND
    LPAD = ((max(KPAD, HR) + 7) // 8) * 8
    TILE_ROWS = HR + 2 * CR
    assert TILE_ROWS % 8 == 0 and HR % 8 == 0 and CR % 8 == 0

    # ---- host-side layout plumbing: fused per-tile data slab ----
    hist_in = jnp.zeros((B, N_HIST, LPAD), f32)
    hist_in = hist_in.at[..., :D].set(x_hist)
    hist_in = hist_in.at[..., D:D + N_HIST_OUT].set(y_hist)
    cand_in = jnp.zeros((B, N_CAND, LPAD), f32)
    cand_in = cand_in.at[..., :D].set(x_cand)
    cand_in = cand_in.at[..., D:D + N_ACQF].set(acqf_params)

    # pooling+expand matrix per tile (mask and exact 1/count folded in on host)
    mask = hist_mask.reshape(B, N_HIST).astype(f32)
    counts = jnp.maximum(jnp.sum(mask, axis=1, keepdims=True), 1e-9)
    wgt = (mask / counts).reshape(n_tiles, bt, N_HIST)                  # (t, bt, NH)
    eye = jnp.eye(bt, dtype=f32)
    pmat = jnp.einsum('ij,tjh->tijh', eye, wgt)                         # block-diag
    pmat = jnp.broadcast_to(pmat[:, :, None, :, :],
                            (n_tiles, bt, N_CAND, bt, N_HIST))
    pmat = pmat.reshape(n_tiles, CR, HR)
    pmat_pad = jnp.zeros((n_tiles, CR, LPAD), f32).at[:, :, :HR].set(pmat)

    data = jnp.concatenate(
        [hist_in.reshape(n_tiles, HR, LPAD),
         cand_in.reshape(n_tiles, CR, LPAD),
         pmat_pad], axis=1).reshape(n_tiles * TILE_ROWS, LPAD)

    # ---- pack the 15 parameter tensors into ONE slab (200 x 128) ----
    def pad2(w, rows, cols):
        return jnp.zeros((rows, cols), f32).at[:w.shape[0], :w.shape[1]].set(w)

    w1_full = pad2(jnp.concatenate([w1x, w1y], axis=0), KPAD, H)        # (KPAD, H)
    wc_full = pad2(wc, KPAD, H)                                         # (KPAD, H)
    w_l1 = jnp.concatenate([w1_full, wc_full], axis=1)                  # (KPAD, 2H)
    wp_full = pad2(jnp.concatenate([jnp.zeros((D, F), f32), wfp], axis=0), KPAD, F)
    w_feat = jnp.concatenate([wfc, wfg, wp_full], axis=0)               # (KF, F)

    bias_rows = jnp.zeros((8, PW), f32)
    bias_rows = bias_rows.at[0, :H].set(b1[0]).at[1, :H].set(b2[0])
    bias_rows = bias_rows.at[2, :H].set(bc[0]).at[3, :F].set(bf[0])
    bias_rows = bias_rows.at[4, :H].set(bh1[0]).at[5, :O].set(bh2[0])

    param_slab = jnp.concatenate(
        [pad2(w_l1, KPAD, PW), pad2(w2, H, PW), pad2(w_feat, KF, PW),
         pad2(wh1, F, PW), pad2(wh2, H, PW), bias_rows], axis=0)        # (P_ROWS, PW)
    assert param_slab.shape == (P_ROWS, PW)

    kernel = functools.partial(_af_kernel, hr=HR, cr=CR)

    out = pl.pallas_call(
        kernel,
        out_shape=jax.ShapeDtypeStruct((B * N_CAND, PW), f32),
        grid_spec=pltpu.PrefetchScalarGridSpec(
            num_scalar_prefetch=0,
            grid=(n_tiles,),
            in_specs=[
                pl.BlockSpec((TILE_ROWS, LPAD), lambda t: (t, 0)),  # per-tile data
                pl.BlockSpec((P_ROWS, PW), lambda t: (0, 0)),       # params, resident
            ],
            out_specs=pl.BlockSpec((CR, PW), lambda t: (t, 0)),
        ),
        compiler_params=pltpu.CompilerParams(
            dimension_semantics=("parallel",)),   # v7x: tiles shard across 2 TCs
    )(data, param_slab)

    return out[:, :O].reshape(B, N_CAND, O)


def _reference(x_hist, y_hist, x_cand, acqf_params, hist_mask, params):
    """Pure-JAX reference of the same forward pass."""
    (w1x, w1y, b1, w2, b2, wc, bc, wfc, wfg, wfp, bf, wh1, bh1, wh2, bh2) = params
    h1 = jax.nn.relu(x_hist @ w1x + y_hist @ w1y + b1)
    h2 = jax.nn.relu(h1 @ w2 + b2)
    denom = jnp.maximum(jnp.sum(hist_mask, axis=1, keepdims=True), 1e-9)
    pooled = jnp.sum(h2 * hist_mask, axis=1, keepdims=True) / denom      # (B,1,H)
    ce = jax.nn.relu(x_cand @ wc + bc)
    feat = jax.nn.relu(ce @ wfc + pooled @ wfg + acqf_params @ wfp + bf)
    hh = jax.nn.relu(feat @ wh1 + bh1)
    return hh @ wh2 + bh2


def _init_params(key):
    ks = jax.random.split(key, 15)

    def w(k, shape, fan_in):
        return jax.random.normal(k, shape, jnp.float32) / jnp.sqrt(float(fan_in))

    return (
        w(ks[0], (D, H), D),                 # W1x
        w(ks[1], (N_HIST_OUT, H), 1),        # W1y
        jnp.zeros((1, H), jnp.float32),      # b1
        w(ks[2], (H, H), H),                 # W2
        jnp.zeros((1, H), jnp.float32),      # b2
        w(ks[3], (D, H), D),                 # Wc
        jnp.zeros((1, H), jnp.float32),      # bc
        w(ks[4], (H, F), H),                 # Wfc
        w(ks[5], (H, F), H),                 # Wfg
        w(ks[6], (N_ACQF, F), N_ACQF),       # Wfp
        jnp.zeros((1, F), jnp.float32),      # bf
        w(ks[7], (F, H), F),                 # Wh1
        jnp.zeros((1, H), jnp.float32),      # bh1
        w(ks[8], (H, O), H),                 # Wh2
        jnp.zeros((1, O), jnp.float32),      # bh2
    )


if __name__ == "__main__":
    B = 4          # small batch; 2 tiles of 2 -> grid=(2,) with a real parallel axis
    BT = 2

    key = jax.random.PRNGKey(0)
    k_in, k_par = jax.random.split(key)
    ki = jax.random.split(k_in, 5)

    x_hist = jax.random.normal(ki[0], (B, N_HIST, D), jnp.float32)
    y_hist = jax.random.normal(ki[1], (B, N_HIST, N_HIST_OUT), jnp.float32)
    x_cand = jax.random.normal(ki[2], (B, N_CAND, D), jnp.float32)
    acqf_params = jax.random.normal(ki[3], (B, N_CAND, N_ACQF), jnp.float32)
    # hist_mask: a few history points are padding
    hist_mask = jnp.ones((B, N_HIST, 1), jnp.float32)
    hist_mask = hist_mask.at[0, -1, 0].set(0.0).at[2, -3:, 0].set(0.0)

    params = _init_params(k_par)

    out = two_part_acqf_net(x_hist, y_hist, x_cand, acqf_params, hist_mask,
                            params, batch_tile=BT)
    out = jax.block_until_ready(out)

    ref = _reference(x_hist, y_hist, x_cand, acqf_params, hist_mask, params)
    assert out.shape == (B, N_CAND, O)
    # exact masked-mean (no approx reciprocal) -> tolerance tightened to 1e-4
    assert jnp.allclose(out, ref, atol=1e-4, rtol=1e-4), "mismatch vs JAX reference"

    print("KERNEL_OK")
</pallas_src>

<mosaic_0001>
module attributes {stable_mosaic.version = 11 : i64} {
  func.func @_af_kernel(%arg0: i32, %arg1: memref<48x16xf32, #tpu.memory_space<vmem>>, %arg2: memref<200x128xf32, #tpu.memory_space<vmem>>, %arg3: memref<16x128xf32, #tpu.memory_space<vmem>>) attributes {dimension_semantics = [#tpu.dimension_semantics<parallel>], iteration_bounds = array<i64: 2>, scalar_prefetch = 0 : i64, scratch_operands = 0 : i64, tpu.core_type = #tpu.core_type<tc>, window_params = [{transform_indices = @transform_0, window_bounds = array<i64: 48, 16>}, {pipeline_mode = #tpu.pipeline_mode<synchronous>, transform_indices = @transform_1, window_bounds = array<i64: 200, 128>}, {transform_indices = @transform_2, window_bounds = array<i64: 16, 128>}]} {
    %c0 = arith.constant 0 : index
    %c0_0 = arith.constant 0 : index
    %0 = vector.load %arg2[%c0, %c0_0] : memref<200x128xf32, #tpu.memory_space<vmem>>, vector<16x64xf32>
    %c16 = arith.constant 16 : index
    %c0_1 = arith.constant 0 : index
    %1 = vector.load %arg2[%c16, %c0_1] : memref<200x128xf32, #tpu.memory_space<vmem>>, vector<32x32xf32>
    %c48 = arith.constant 48 : index
    %c0_2 = arith.constant 0 : index
    %2 = vector.load %arg2[%c48, %c0_2] : memref<200x128xf32, #tpu.memory_space<vmem>>, vector<80x32xf32>
    %c128 = arith.constant 128 : index
    %c0_3 = arith.constant 0 : index
    %3 = vector.load %arg2[%c128, %c0_3] : memref<200x128xf32, #tpu.memory_space<vmem>>, vector<32x32xf32>
    %c160 = arith.constant 160 : index
    %c0_4 = arith.constant 0 : index
    %4 = vector.load %arg2[%c160, %c0_4] : memref<200x128xf32, #tpu.memory_space<vmem>>, vector<32x128xf32>
    %c192 = arith.constant 192 : index
    %c0_5 = arith.constant 0 : index
    %5 = vector.load %arg2[%c192, %c0_5] : memref<200x128xf32, #tpu.memory_space<vmem>>, vector<1x32xf32>
    %c193 = arith.constant 193 : index
    %c0_6 = arith.constant 0 : index
    %6 = vector.load %arg2[%c193, %c0_6] : memref<200x128xf32, #tpu.memory_space<vmem>>, vector<1x32xf32>
    %c194 = arith.constant 194 : index
    %c0_7 = arith.constant 0 : index
    %7 = vector.load %arg2[%c194, %c0_7] : memref<200x128xf32, #tpu.memory_space<vmem>>, vector<1x32xf32>
    %c195 = arith.constant 195 : index
    %c0_8 = arith.constant 0 : index
    %8 = vector.load %arg2[%c195, %c0_8] : memref<200x128xf32, #tpu.memory_space<vmem>>, vector<1x32xf32>
    %c196 = arith.constant 196 : index
    %c0_9 = arith.constant 0 : index
    %9 = vector.load %arg2[%c196, %c0_9] : memref<200x128xf32, #tpu.memory_space<vmem>>, vector<1x32xf32>
    %c197 = arith.constant 197 : index
    %c0_10 = arith.constant 0 : index
    %10 = vector.load %arg2[%c197, %c0_10] : memref<200x128xf32, #tpu.memory_space<vmem>>, vector<1x128xf32>
    %c0_11 = arith.constant 0 : index
    %c0_12 = arith.constant 0 : index
    %11 = vector.load %arg1[%c0_11, %c0_12] : memref<48x16xf32, #tpu.memory_space<vmem>>, vector<32x16xf32>
    %c16_13 = arith.constant 16 : index
    %c0_14 = arith.constant 0 : index
    %12 = vector.load %arg1[%c16_13, %c0_14] : memref<48x16xf32, #tpu.memory_space<vmem>>, vector<16x16xf32>
    %c32 = arith.constant 32 : index
    %c0_15 = arith.constant 0 : index
    %13 = vector.load %arg1[%c32, %c0_15] : memref<48x16xf32, #tpu.memory_space<vmem>>, vector<16x16xf32>
    %cst = arith.constant dense<0.000000e+00> : vector<32x64xf32>
    %14 = tpu.matmul %11, %0, %cst {dimension_numbers = #tpu.dot_dimension_numbers<[1], [0], [0], [1], [0, 0, 1, 1], [], []>} : vector<32x16xf32>, vector<16x64xf32>, vector<32x64xf32> -> vector<32x64xf32>
    %15 = vector.extract_strided_slice %14 {offsets = [0, 0], sizes = [16, 32], strides = [1, 1]} : vector<32x64xf32> to vector<16x32xf32>
    %16 = vector.broadcast %5 : vector<1x32xf32> to vector<16x32xf32>
    %17 = arith.addf %15, %16 : vector<16x32xf32>
    %cst_16 = arith.constant 0.000000e+00 : f32
    %18 = vector.broadcast %cst_16 : f32 to vector<16x32xf32>
    %19 = arith.maximumf %17, %18 : vector<16x32xf32>
    %20 = vector.extract_strided_slice %14 {offsets = [16, 32], sizes = [16, 32], strides = [1, 1]} : vector<32x64xf32> to vector<16x32xf32>
    %21 = vector.broadcast %7 : vector<1x32xf32> to vector<16x32xf32>
    %22 = arith.addf %20, %21 : vector<16x32xf32>
    %cst_17 = arith.constant 0.000000e+00 : f32
    %23 = vector.broadcast %cst_17 : f32 to vector<16x32xf32>
    %24 = arith.maximumf %22, %23 : vector<16x32xf32>
    %cst_18 = arith.constant dense<0.000000e+00> : vector<16x32xf32>
    %25 = tpu.matmul %19, %1, %cst_18 {dimension_numbers = #tpu.dot_dimension_numbers<[1], [0], [0], [1], [0, 0, 1, 1], [], []>} : vector<16x32xf32>, vector<32x32xf32>, vector<16x32xf32> -> vector<16x32xf32>
    %26 = vector.broadcast %6 : vector<1x32xf32> to vector<16x32xf32>
    %27 = arith.addf %25, %26 : vector<16x32xf32>
    %cst_19 = arith.constant 0.000000e+00 : f32
    %28 = vector.broadcast %cst_19 : f32 to vector<16x32xf32>
    %29 = arith.maximumf %27, %28 : vector<16x32xf32>
    %cst_20 = arith.constant dense<0.000000e+00> : vector<16x32xf32>
    %30 = tpu.matmul %13, %29, %cst_20 {dimension_numbers = #tpu.dot_dimension_numbers<[1], [0], [0], [1], [0, 0, 1, 1], [], []>} : vector<16x16xf32>, vector<16x32xf32>, vector<16x32xf32> -> vector<16x32xf32>
    %31 = tpu.concatenate %24, %30, %12 in 1 : vector<16x32xf32>, vector<16x32xf32>, vector<16x16xf32> -> vector<16x80xf32>
    %cst_21 = arith.constant dense<0.000000e+00> : vector<16x32xf32>
    %32 = tpu.matmul %31, %2, %cst_21 {dimension_numbers = #tpu.dot_dimension_numbers<[1], [0], [0], [1], [0, 0, 1, 1], [], []>} : vector<16x80xf32>, vector<80x32xf32>, vector<16x32xf32> -> vector<16x32xf32>
    %33 = vector.broadcast %8 : vector<1x32xf32> to vector<16x32xf32>
    %34 = arith.addf %32, %33 : vector<16x32xf32>
    %cst_22 = arith.constant 0.000000e+00 : f32
    %35 = vector.broadcast %cst_22 : f32 to vector<16x32xf32>
    %36 = arith.maximumf %34, %35 : vector<16x32xf32>
    %cst_23 = arith.constant dense<0.000000e+00> : vector<16x32xf32>
    %37 = tpu.matmul %36, %3, %cst_23 {dimension_numbers = #tpu.dot_dimension_numbers<[1], [0], [0], [1], [0, 0, 1, 1], [], []>} : vector<16x32xf32>, vector<32x32xf32>, vector<16x32xf32> -> vector<16x32xf32>
    %38 = vector.broadcast %9 : vector<1x32xf32> to vector<16x32xf32>
    %39 = arith.addf %37, %38 : vector<16x32xf32>
    %cst_24 = arith.constant 0.000000e+00 : f32
    %40 = vector.broadcast %cst_24 : f32 to vector<16x32xf32>
    %41 = arith.maximumf %39, %40 : vector<16x32xf32>
    %cst_25 = arith.constant dense<0.000000e+00> : vector<16x128xf32>
    %42 = tpu.matmul %41, %4, %cst_25 {dimension_numbers = #tpu.dot_dimension_numbers<[1], [0], [0], [1], [0, 0, 1, 1], [], []>} : vector<16x32xf32>, vector<32x128xf32>, vector<16x128xf32> -> vector<16x128xf32>
    %43 = vector.broadcast %10 : vector<1x128xf32> to vector<16x128xf32>
    %44 = arith.addf %42, %43 : vector<16x128xf32>
    %c0_26 = arith.constant 0 : index
    %c0_27 = arith.constant 0 : index
    %45 = vector.load %arg3[%c0_26, %c0_27] : memref<16x128xf32, #tpu.memory_space<vmem>>, vector<16x128xf32>
    tpu.vector_store %arg3[%c0_26, %c0_27], %44 {strides = array<i32>} : memref<16x128xf32, #tpu.memory_space<vmem>>, vector<16x128xf32>,
    return
  }
  func.func @transform_0(%arg0: i32) -> (i32, i32) {
    %c0_i32 = arith.constant 0 : i32
    %c0_i32_0 = arith.constant 0 : i32
    return %arg0, %c0_i32 : i32, i32
  }
  func.func @transform_1(%arg0: i32) -> (i32, i32) {
    %c0_i32 = arith.constant 0 : i32
    %c0_i32_0 = arith.constant 0 : i32
    %c0_i32_1 = arith.constant 0 : i32
    return %c0_i32, %c0_i32_0 : i32, i32
  }
  func.func @transform_2(%arg0: i32) -> (i32, i32) {
    %c0_i32 = arith.constant 0 : i32
    %c0_i32_0 = arith.constant 0 : i32
    return %arg0, %c0_i32 : i32, i32
  }
}

</mosaic_0001>

<llo_original>
// kernel: tpu_custom_call.1
$region0: #{tpu_custom_call.1}
  #allocation0 [shape = 'u32[]', space=smem, size = 0x4, offset = 0x4, fixed_abs, tag = 'smem constant byte address 0x4 - core index']
  #allocation1 [shape = 'u32[144,128]{1,0:T(1,128)}', space=vmem, size = 0x12000, scoped, tag = 'internal scratch']
  %s0 = inlined_call_operand.vmem [shape: f32[96,16], index: 0, kind: input, shape index: {}]
  %s1 = inlined_call_operand.hbm [shape: f32[200,128], index: 1, kind: input, shape index: {}]
  %s2 = inlined_call_operand.hbm [shape: f32[32,128], index: 2, kind: output, shape index: {}]
  %s3 = sld [smem:[#allocation0]]
  $region45: #{tpu_custom_call.1} parent=0
    _
  %s5 = ssub.s32 1, %s3
  %s6 = scalar_select 0, %s5, %s3
  $region1: #{tpu_custom_call.1} parent=0
    #allocation2 [shape = 'u8[102400]{0}', space=vmem, size = 0x19000, scoped, tag = 'input window, operand 1, single buffered']
    #allocation3 [shape = 's32[2]{0}', space=sflag, size = 0x8, scoped, tag = 'scoped memory for tpu_custom_call.1']
    #allocation4 [shape = 's32[2]{0}', space=sflag, size = 0x8, scoped, tag = 'scoped memory for tpu_custom_call.1']
    #allocation5 [shape = 'u8[16384]{0}', space=vmem, size = 0x4000, scoped, tag = 'output window, operand 0']
    %7 = vsyncpa [#allocation3], 0
    %8 = vsyncpa [#allocation4], 0
    %s9 = scalar_lea.sflag [#allocation4], 1
    %10 = vsyncpa %s9, 0
    loop: start=0, step=1, limit=4
    $region2: #{tpu_custom_call.1} parent=1 // loop_pre_header
      _
    $region3: #{tpu_custom_call.1} parent=1 // loop_header
      %s12 = sphi 0, %s16
      %p13 = scmp.ge.s32.totalorder %s12, 4
      %s22 = sphi 0, %s24
      %s25 = sphi 0, %s22
      %s26 = sphi 0, %s25
      %s42 = sphi 0, %s26
      %s46 = sphi 0, %s46
      %s48 = sphi 0, %s46
      %s49 = sphi 0, %s48
      %s63 = sphi 0, %s49
      %s69 = sphi 0, %s71
      %s72 = sphi 0, %s69
      %s73 = sphi 0, %s72
      %s89 = sphi 0, %s73
    $region4: #{tpu_custom_call.1} parent=1 // loop_header_branch
      %15 = sbr.rel (%p13) target = $region8
    $region5: #{tpu_custom_call.1} parent=1 // loop_body
      %s17 = ssub.s32 %s12, 1
      %s18 = ssub.s32 %s12, 2
      %s19 = sadd.s32 %s12, 1
      %s20 = ssub.s32 %s12, %s19
      %p21 = scmp.eq.s32.totalorder %s20, 0
      %s23 = sadd.s32 %s22, 1
      %s24 = scalar_select %p21, %s22, %s23
      %p27 = pneg %p21
      %p28 = scmp.eq.s32.totalorder %s12, 1
      %p29 = por %p27, %p28
      %p30 = scmp.ne.s32.totalorder %s22, %s25
      %p31 = scmp.eq.s32.totalorder %s12, 0
      %p32 = por %p30, %p31
      %p33 = scmp.ne.s32.totalorder %s22, %s25
      %p34 = scmp.eq.s32.totalorder %s17, 1
      %p35 = por %p33, %p34
      %p36 = scmp.ne.s32.totalorder %s25, %s26
      %p37 = scmp.eq.s32.totalorder %s17, 0
      %p38 = por %p36, %p37
      %p39 = scmp.ne.s32.totalorder %s25, %s26
      %p40 = scmp.eq.s32.totalorder %s18, 1
      %p41 = por %p39, %p40
      %p43 = scmp.ne.s32.totalorder %s26, %s42
      %p44 = scmp.eq.s32.totalorder %s18, 0
      %p45 = por %p43, %p44
      %s47 = sadd.s32 %s46, 1
      %p50 = scmp.eq.s32.totalorder %s12, 1
      %p51 = scmp.ne.s32.totalorder %s46, %s48
      %p52 = scmp.eq.s32.totalorder %s12, 0
      %p53 = por %p51, %p52
      %p54 = scmp.ne.s32.totalorder %s46, %s48
      %p55 = scmp.eq.s32.totalorder %s17, 1
      %p56 = por %p54, %p55
      %p57 = scmp.ne.s32.totalorder %s48, %s49
      %p58 = scmp.eq.s32.totalorder %s17, 0
      %p59 = por %p57, %p58
      %p60 = scmp.ne.s32.totalorder %s48, %s49
      %p61 = scmp.eq.s32.totalorder %s18, 1
      %p62 = por %p60, %p61
      %p64 = scmp.ne.s32.totalorder %s49, %s63
      %p65 = scmp.eq.s32.totalorder %s18, 0
      %p66 = por %p64, %p65
      %s67 = ssub.s32 %s12, %s19
      %p68 = scmp.eq.s32.totalorder %s67, 0
      %s70 = sadd.s32 %s69, 1
      %s71 = scalar_select %p68, %s69, %s70
      %p74 = pneg %p68
      %p75 = scmp.eq.s32.totalorder %s12, 1
      %p76 = por %p74, %p75
      %p77 = scmp.ne.s32.totalorder %s69, %s72
      %p78 = scmp.eq.s32.totalorder %s12, 0
      %p79 = por %p77, %p78
      %p80 = scmp.ne.s32.totalorder %s69, %s72
      %p81 = scmp.eq.s32.totalorder %s17, 1
      %p82 = por %p80, %p81
      %p83 = scmp.ne.s32.totalorder %s72, %s73
      %p84 = scmp.eq.s32.totalorder %s17, 0
      %p85 = por %p83, %p84
      %p86 = scmp.ne.s32.totalorder %s72, %s73
      %p87 = scmp.eq.s32.totalorder %s18, 1
      %p88 = por %p86, %p87
      %p90 = scmp.ne.s32.totalorder %s73, %s89
      %p91 = scmp.eq.s32.totalorder %s18, 0
      %p92 = por %p90, %p91
      %p93 = scmp.le.s32.totalorder 1, %s12
      %p94 = scmp.lt.s32.totalorder %s12, 3
      %p95 = pnand %p93, %p94
      %p96 = pneg %p95
      // Predicated region
      $region9: #{tpu_custom_call.1} parent=5 // pred_check
        _
      $region10: #{tpu_custom_call.1} parent=5 // pred_check_branch
        %98 = sbr.rel (%p95) target = $region12
      $region11: #{tpu_custom_call.1} parent=5 // pred_region
        %s99 = ssub.s32 %s12, 1
        // Predicated region
        $region13: #{tpu_custom_call.1} parent=11 // pred_check
          %p100 = pneg %p59
        $region14: #{tpu_custom_call.1} parent=11 // pred_check_branch
          %102 = sbr.rel (%p100) target = $region16
        $region15: #{tpu_custom_call.1} parent=11 // pred_region
          %s104 = ssub.s32 3200, 3200
          %105 = vsyncadd [#allocation3], %s104
          %s106 = sshll.u32 [#allocation2], 4
          %s107 = int_to_ptr.vmem [resolvable:$true] %s106
          %112 = dma.hbm_to_vmem [thread:$0]  %s1, 3200, %s107, [#allocation3], 128, 128, 8
        $region16: #{tpu_custom_call.1} parent=11 // pred_fallthru
          _
      $region12: #{tpu_custom_call.1} parent=5 // pred_fallthru
        _
      %p113 = scmp.lt.s32.totalorder %s12, 2
      // Predicated region
      $region17: #{tpu_custom_call.1} parent=5 // pred_check
        %p114 = pneg %p113
      $region18: #{tpu_custom_call.1} parent=5 // pred_check_branch
        %116 = sbr.rel (%p114) target = $region20
      $region19: #{tpu_custom_call.1} parent=5 // pred_region
        // Predicated region
        $region21: #{tpu_custom_call.1} parent=19 // pred_check
          %p117 = pneg %p32
        $region22: #{tpu_custom_call.1} parent=19 // pred_check_branch
          %119 = sbr.rel (%p117) target = $region24
        $region23: #{tpu_custom_call.1} parent=19 // pred_region
          %s120 = smul.u32 6, %s12
          %p121 = scmp.lt.s32.totalorder %s120, 11
          %s122 = scalar_select %p121, %s120, 11
          %s123 = smul.addr %s122, 8
          %s124 = scalar_lea.vmem %s0, %s123
          %s125 = smul.u32 6, %s12
        $region24: #{tpu_custom_call.1} parent=19 // pred_fallthru
          _
      $region20: #{tpu_custom_call.1} parent=5 // pred_fallthru
        _
      %p126 = scmp.le.s32.totalorder 1, %s12
      %p127 = scmp.lt.s32.totalorder %s12, 3
      %p128 = pnand %p126, %p127
      %p129 = pneg %p128
      // Predicated region
      $region25: #{tpu_custom_call.1} parent=5 // pred_check
        _
      $region26: #{tpu_custom_call.1} parent=5 // pred_check_branch
        %131 = sbr.rel (%p128) target = $region28
      $region27: #{tpu_custom_call.1} parent=5 // pred_region
        %s132 = ssub.s32 %s12, 1
        // Predicated region
        $region29: #{tpu_custom_call.1} parent=27 // pred_check
          %p133 = pneg %p59
        $region30: #{tpu_custom_call.1} parent=27 // pred_check_branch
          %135 = sbr.rel (%p133) target = $region32
        $region31: #{tpu_custom_call.1} parent=27 // pred_region
          %136 = dma.done [#allocation3], 3200
        $region32: #{tpu_custom_call.1} parent=27 // pred_fallthru
          _
        %s137 = smul.u32 6, %s17
        %p138 = scmp.lt.s32.totalorder %s137, 11
        %s139 = scalar_select %p138, %s137, 11
        %s140 = smul.addr %s139, 8
        %s141 = scalar_lea.vmem %s0, %s140
        %p142 = pneg %p38
        %p143 = pneg %p35
        %p144 = pneg %p59
        %p145 = pneg %p56
        %p146 = pneg %p85
        %p147 = pneg %p82
        %s148 = sand.u32 %s72, 1
        %s149 = scalar_lea.sflag [#allocation4], %s148
        %s150 = sand.u32 %s72, 1
        %s151 = smul.addr %s150, 16
        %s152 = scalar_lea.vmem [#allocation5], %s151
        %s153 = smul.u32 6, %s17
        %p154 = scmp.lt.s32.totalorder %s153, 11
        %s155 = scalar_select %p154, %s153, 11
        %s156 = smul.addr %s155, 8
        %s157 = scalar_lea.vmem %s0, %s156
        %s158 = smul.u32 6, %s17
        %s159 = smul.u32 2, %s17
        %v160 = vld [vmem:[#allocation2] sm:$0xff]
        %v161 = vld [vmem:[#allocation2 + $0x8] sm:$0xff]
        %v162 = vld [vmem:[#allocation2 + $0x10] sm:$0xff]
        %v163 = vld [vmem:[#allocation2 + $0x18] sm:$0xff]
        %v164 = vld [vmem:[#allocation2 + $0x20] sm:$0xff]
        %v165 = vld [vmem:[#allocation2 + $0x28] sm:$0xff]
        %v166 = vld [vmem:[#allocation2 + $0x30] sm:$0xff]
        %v167 = vld [vmem:[#allocation2 + $0x38] sm:$0xff]
        %v168 = vld [vmem:[#allocation2 + $0x40] sm:$0xff]
        %v169 = vld [vmem:[#allocation2 + $0x48] sm:$0xff]
        %v170 = vld [vmem:[#allocation2 + $0x50] sm:$0xff]
        %v171 = vld [vmem:[#allocation2 + $0x58] sm:$0xff]
        %v172 = vld [vmem:[#allocation2 + $0x60] sm:$0xff]
        %v173 = vld [vmem:[#allocation2 + $0x68] sm:$0xff]
        %v174 = vld [vmem:[#allocation2 + $0x70] sm:$0xff]
        %v175 = vld [vmem:[#allocation2 + $0x78] sm:$0xff]
        %v176 = vld [vmem:[#allocation2 + $0x80] sm:$0xff]
        %v177 = vld [vmem:[#allocation2 + $0x88] sm:$0xff]
        %v178 = vld [vmem:[#allocation2 + $0x90] sm:$0xff]
        %v179 = vld [vmem:[#allocation2 + $0x98] sm:$0xff]
        %v180 = vld [vmem:[#allocation2 + $0xa0] sm:$0xff]
        %v181 = vld [vmem:[#allocation2 + $0xa8] sm:$0xff]
        %v182 = vld [vmem:[#allocation2 + $0xb0] sm:$0xff]
        %v183 = vld [vmem:[#allocation2 + $0xb8] sm:$0xff]
        %v184 = vld [vmem:[#allocation2 + $0xc0] sm:$0x1]
        %v185 = vld [vmem:[#allocation2 + $0xc1] sm:$0x1]
        %v186 = vld [vmem:[#allocation2 + $0xc2] sm:$0x1]
        %v187 = vld [vmem:[#allocation2 + $0xc3] sm:$0x1]
        %v188 = vld [vmem:[#allocation2 + $0xc4] sm:$0x1]
        %v189 = vld [vmem:[#allocation2 + $0xc5] sm:$0x1]
        %v190 = vld [vmem:[%s157] sm:$0xff]
        %v191 = vld [vmem:[%s157 + $0x8] sm:$0xff]
        %v192 = vld [vmem:[%s157 + $0x10] sm:$0xff]
        %v193 = vld [vmem:[%s157 + $0x18] sm:$0xff]
        %v194 = vld [vmem:[%s157 + $0x20] sm:$0xff]
        %v195 = vld [vmem:[%s157 + $0x28] sm:$0xff]
        %vm196 = vcmask 130048
        %v198 = vsel %vm196, %v190, 0
        %v201 = vsel %vm196, %v191, 0
        %v204 = vsel %vm196, %v192, 0
        %v207 = vsel %vm196, %v193, 0
        %209 = vmatprep.subr.mxu0 0.0
        %210 = vmatpush1.msra.mxu0 0.0
        %211 = vmatprep.subr.mxu0 0.0
        %212 = vmatpush1.msra.mxu0 0.0
        %213 = vmatprep.subr.mxu0 0.0
        %214 = vmatpush1.msra.mxu0 0.0
        %215 = vmatprep.subr.mxu0 0.0
        %216 = vmatpush1.msra.mxu0 0.0
        %217 = vmatprep.subr.mxu0 0.0
        %218 = vmatpush1.msra.mxu0 0.0
        %219 = vmatprep.subr.mxu0 0.0
        %220 = vmatpush1.msra.mxu0 0.0
        %221 = vmatprep.subr.mxu0 0.0
        %222 = vmatpush1.msra.mxu0 0.0
        %223 = vmatprep.subr.mxu0 0.0
        %224 = vmatpush1.msra.mxu0 0.0
        %225 = vmatprep.subr.mxu0 0.0
        %226 = vmatpush1.msra.mxu0 0.0
        %227 = vmatprep.subr.mxu0 0.0
        %228 = vmatpush1.msra.mxu0 0.0
        %229 = vmatprep.subr.mxu0 0.0
        %230 = vmatpush1.msra.mxu0 0.0
        %231 = vmatprep.subr.mxu0 0.0
        %232 = vmatpush1.msra.mxu0 0.0
        %233 = vmatprep.subr.mxu0 0.0
        %234 = vmatpush1.msra.mxu0 0.0
        %235 = vmatprep.subr.mxu0 0.0
        %236 = vmatpush1.msra.mxu0 0.0
        %237 = vmatprep.subr.mxu0 0.0
        %238 = vmatpush1.msra.mxu0 %v161
        %239 = vmatprep.subr.mxu0 0.0
        %240 = vmatpush1.msra.mxu0 %v160
        %241 = vmatprep.subr.mxu0 0.0
        %242 = vmatpush2.msra.mxu0 0.0
        %243 = vmatprep.subr.mxu0 0.0
        %244 = vmatpush2.msra.mxu0 0.0
        %245 = vmatprep.subr.mxu0 0.0
        %246 = vmatpush2.msra.mxu0 0.0
        %247 = vmatprep.subr.mxu0 0.0
        %248 = vmatpush2.msra.mxu0 0.0
        %249 = vmatprep.subr.mxu0 0.0
        %250 = vmatpush2.msra.mxu0 0.0
        %251 = vmatprep.subr.mxu0 0.0
        %252 = vmatpush2.msra.mxu0 0.0
        %253 = vmatprep.subr.mxu0 0.0
        %254 = vmatpush2.msra.mxu0 0.0
        %255 = vmatprep.subr.mxu0 0.0
        %256 = vmatpush2.msra.mxu0 0.0
        %257 = vmatprep.subr.mxu0 0.0
        %258 = vmatpush2.msra.mxu0 0.0
        %259 = vmatprep.subr.mxu0 0.0
        %260 = vmatpush2.msra.mxu0 0.0
        %261 = vmatprep.subr.mxu0 0.0
        %262 = vmatpush2.msra.mxu0 0.0
        %263 = vmatprep.subr.mxu0 0.0
        %264 = vmatpush2.msra.mxu0 0.0
        %265 = vmatprep.subr.mxu0 0.0
        %266 = vmatpush2.msra.mxu0 0.0
        %267 = vmatprep.subr.mxu0 0.0
        %268 = vmatpush2.msra.mxu0 0.0
        %269 = vmatprep.subr.mxu0 0.0
        %270 = vmatpush2.msra.mxu0 0.0
        %271 = vmatprep.subr.mxu0 0.0
        %272 = vmatpush2.msra.mxu0 0.0
        %273 = vmatprep.mubr.f32.mxu0 0.0
        %274 = vmatmul.mubr.f32.gmra.mxu0 %v198
        %v275 = vpop.f32.mrf.mxu0
        %v276 = vadd.f32 0.0, %v275
        %v277 = vpop.f32.mrf.mxu0
        %278 = vmatprep.mubr.f32.mxu0 0.0
        %279 = vmatmul.mubr.f32.gmra.mxu0 %v201
        %v280 = vpop.f32.mrf.mxu0
        %v281 = vadd.f32 0.0, %v280
        %v282 = vpop.f32.mrf.mxu0
        %283 = vmatprep.mubr.f32.mxu0 0.0
        %284 = vmatmul.mubr.f32.gmra.mxu0 %v204
        %v285 = vpop.f32.mrf.mxu0
        %v286 = vadd.f32 0.0, %v285
        %v287 = vpop.f32.mrf.mxu0
        %288 = vmatprep.mubr.f32.mxu0 0.0
        %289 = vmatmul.mubr.f32.gmra.mxu0 %v207
        %v290 = vpop.f32.mrf.mxu0
        %v291 = vadd.f32 0.0, %v290
        %v292 = vpop.f32.mrf.mxu0
        %293 = vdwg.mxu0
        %v294 = vlaneseq
        %v295 = vshrl.u32 %v294, 7
        %v296 = vsub.s32 0, %v295
        %v297 = vrot.slane %v184, %v296
        %v298 = vadd.f32 %v276, %v297
        %v299 = vadd.f32 %v281, %v297
        %v300 = vmax.f32 %v298, 0.0
        %v301 = vmax.f32 %v299, 0.0
        %v302 = vlaneseq
        %v303 = vshrl.u32 %v302, 7
        %v304 = vsub.s32 0, %v303
        %v305 = vrot.slane %v186, %v304
        %307 = vrot.lane.b32.xlu0 %v305, 32
        %v308 = vpop.permute.xlu0 %307
        %v310 = vadd.f32 %v286, %v308
        %v311 = vadd.f32 %v291, %v308
        %v312 = vmax.f32 %v310, 0.0
        %v313 = vmax.f32 %v311, 0.0
        %v314 = vlaneseq
        %v315 = vshrl.u32 %v314, 7
        %v316 = vsub.s32 0, %v315
        %v317 = vrot.slane %v185, %v316
        %vm318 = vcmask 261120
        %v320 = vsel %vm318, %v300, 0
        %v323 = vsel %vm318, %v301, 0
        %325 = vmatprep.subr.mxu0 0.0
        %326 = vmatpush1.msra.mxu0 0.0
        %327 = vmatprep.subr.mxu0 0.0
        %328 = vmatpush1.msra.mxu0 0.0
        %329 = vmatprep.subr.mxu0 0.0
        %330 = vmatpush1.msra.mxu0 0.0
        %331 = vmatprep.subr.mxu0 0.0
        %332 = vmatpush1.msra.mxu0 0.0
        %333 = vmatprep.subr.mxu0 0.0
        %334 = vmatpush1.msra.mxu0 0.0
        %335 = vmatprep.subr.mxu0 0.0
        %336 = vmatpush1.msra.mxu0 0.0
        %337 = vmatprep.subr.mxu0 0.0
        %338 = vmatpush1.msra.mxu0 0.0
        %339 = vmatprep.subr.mxu0 0.0
        %340 = vmatpush1.msra.mxu0 0.0
        %341 = vmatprep.subr.mxu0 0.0
        %342 = vmatpush1.msra.mxu0 0.0
        %343 = vmatprep.subr.mxu0 0.0
        %344 = vmatpush1.msra.mxu0 0.0
        %345 = vmatprep.subr.mxu0 0.0
        %346 = vmatpush1.msra.mxu0 0.0
        %347 = vmatprep.subr.mxu0 0.0
        %348 = vmatpush1.msra.mxu0 0.0
        %349 = vmatprep.subr.mxu0 0.0
        %350 = vmatpush1.msra.mxu0 %v165
        %351 = vmatprep.subr.mxu0 0.0
        %352 = vmatpush1.msra.mxu0 %v164
        %353 = vmatprep.subr.mxu0 0.0
        %354 = vmatpush1.msra.mxu0 %v163
        %355 = vmatprep.subr.mxu0 0.0
        %356 = vmatpush1.msra.mxu0 %v162
        %357 = vmatprep.subr.mxu0 0.0
        %358 = vmatpush2.msra.mxu0 0.0
        %359 = vmatprep.subr.mxu0 0.0
        %360 = vmatpush2.msra.mxu0 0.0
        %361 = vmatprep.subr.mxu0 0.0
        %362 = vmatpush2.msra.mxu0 0.0
        %363 = vmatprep.subr.mxu0 0.0
        %364 = vmatpush2.msra.mxu0 0.0
        %365 = vmatprep.subr.mxu0 0.0
        %366 = vmatpush2.msra.mxu0 0.0
        %367 = vmatprep.subr.mxu0 0.0
        %368 = vmatpush2.msra.mxu0 0.0
        %369 = vmatprep.subr.mxu0 0.0
        %370 = vmatpush2.msra.mxu0 0.0
        %371 = vmatprep.subr.mxu0 0.0
        %372 = vmatpush2.msra.mxu0 0.0
        %373 = vmatprep.subr.mxu0 0.0
        %374 = vmatpush2.msra.mxu0 0.0
        %375 = vmatprep.subr.mxu0 0.0
        %376 = vmatpush2.msra.mxu0 0.0
        %377 = vmatprep.subr.mxu0 0.0
        %378 = vmatpush2.msra.mxu0 0.0
        %379 = vmatprep.subr.mxu0 0.0
        %380 = vmatpush2.msra.mxu0 0.0
        %381 = vmatprep.subr.mxu0 0.0
        %382 = vmatpush2.msra.mxu0 0.0
        %383 = vmatprep.subr.mxu0 0.0
        %384 = vmatpush2.msra.mxu0 0.0
        %385 = vmatprep.subr.mxu0 0.0
        %386 = vmatpush2.msra.mxu0 0.0
        %387 = vmatprep.subr.mxu0 0.0
        %388 = vmatpush2.msra.mxu0 0.0
        %389 = vmatprep.mubr.f32.mxu0 0.0
        %390 = vmatmul.mubr.f32.gmra.mxu0 %v320
        %v391 = vpop.f32.mrf.mxu0
        %v392 = vadd.f32 %v317, %v391
        %v393 = vpop.f32.mrf.mxu0
        %394 = vmatprep.mubr.f32.mxu0 0.0
        %395 = vmatmul.mubr.f32.gmra.mxu0 %v323
        %v396 = vpop.f32.mrf.mxu0
        %v397 = vadd.f32 %v317, %v396
        %v398 = vpop.f32.mrf.mxu0
        %399 = vdwg.mxu0
        %v400 = vmax.f32 %v392, 0.0
        %v401 = vmax.f32 %v397, 0.0
        %v403 = vsel %vm196, %v194, 0
        %v406 = vsel %vm196, %v195, 0
        %408 = vmatprep.subr.mxu0 0.0
        %409 = vmatpush1.msra.mxu0 0.0
        %410 = vmatprep.subr.mxu0 0.0
        %411 = vmatpush1.msra.mxu0 0.0
        %412 = vmatprep.subr.mxu0 0.0
        %413 = vmatpush1.msra.mxu0 0.0
        %414 = vmatprep.subr.mxu0 0.0
        %415 = vmatpush1.msra.mxu0 0.0
        %416 = vmatprep.subr.mxu0 0.0
        %417 = vmatpush1.msra.mxu0 0.0
        %418 = vmatprep.subr.mxu0 0.0
        %419 = vmatpush1.msra.mxu0 0.0
        %420 = vmatprep.subr.mxu0 0.0
        %421 = vmatpush1.msra.mxu0 0.0
        %422 = vmatprep.subr.mxu0 0.0
        %423 = vmatpush1.msra.mxu0 0.0
        %424 = vmatprep.subr.mxu0 0.0
        %425 = vmatpush1.msra.mxu0 0.0
        %426 = vmatprep.subr.mxu0 0.0
        %427 = vmatpush1.msra.mxu0 0.0
        %428 = vmatprep.subr.mxu0 0.0
        %429 = vmatpush1.msra.mxu0 0.0
        %430 = vmatprep.subr.mxu0 0.0
        %431 = vmatpush1.msra.mxu0 0.0
        %432 = vmatprep.subr.mxu0 0.0
        %433 = vmatpush1.msra.mxu0 0.0
        %434 = vmatprep.subr.mxu0 0.0
        %435 = vmatpush1.msra.mxu0 0.0
        %436 = vmatprep.subr.mxu0 0.0
        %437 = vmatpush1.msra.mxu0 %v401
        %438 = vmatprep.subr.mxu0 0.0
        %439 = vmatpush1.msra.mxu0 %v400
        %440 = vmatprep.subr.mxu0 0.0
        %441 = vmatpush2.msra.mxu0 0.0
        %442 = vmatprep.subr.mxu0 0.0
        %443 = vmatpush2.msra.mxu0 0.0
        %444 = vmatprep.subr.mxu0 0.0
        %445 = vmatpush2.msra.mxu0 0.0
        %446 = vmatprep.subr.mxu0 0.0
        %447 = vmatpush2.msra.mxu0 0.0
        %448 = vmatprep.subr.mxu0 0.0
        %449 = vmatpush2.msra.mxu0 0.0
        %450 = vmatprep.subr.mxu0 0.0
        %451 = vmatpush2.msra.mxu0 0.0
        %452 = vmatprep.subr.mxu0 0.0
        %453 = vmatpush2.msra.mxu0 0.0
        %454 = vmatprep.subr.mxu0 0.0
        %455 = vmatpush2.msra.mxu0 0.0
        %456 = vmatprep.subr.mxu0 0.0
        %457 = vmatpush2.msra.mxu0 0.0
        %458 = vmatprep.subr.mxu0 0.0
        %459 = vmatpush2.msra.mxu0 0.0
        %460 = vmatprep.subr.mxu0 0.0
        %461 = vmatpush2.msra.mxu0 0.0
        %462 = vmatprep.subr.mxu0 0.0
        %463 = vmatpush2.msra.mxu0 0.0
        %464 = vmatprep.subr.mxu0 0.0
        %465 = vmatpush2.msra.mxu0 0.0
        %466 = vmatprep.subr.mxu0 0.0
        %467 = vmatpush2.msra.mxu0 0.0
        %468 = vmatprep.subr.mxu0 0.0
        %469 = vmatpush2.msra.mxu0 0.0
        %470 = vmatprep.subr.mxu0 0.0
        %471 = vmatpush2.msra.mxu0 0.0
        %472 = vmatprep.mubr.f32.mxu0 0.0
        %473 = vmatmul.mubr.f32.gmra.mxu0 %v403
        %v474 = vpop.f32.mrf.mxu0
        %v475 = vadd.f32 0.0, %v474
        %v476 = vpop.f32.mrf.mxu0
        %477 = vmatprep.mubr.f32.mxu0 0.0
        %478 = vmatmul.mubr.f32.gmra.mxu0 %v406
        %v479 = vpop.f32.mrf.mxu0
        %v480 = vadd.f32 0.0, %v479
        %v481 = vpop.f32.mrf.mxu0
        %482 = vdwg.mxu0
        %485 = vrot.lane.b32.xlu0 %v312, 96
        %v486 = vpop.permute.xlu0 %485
        %487 = vrot.lane.b32.xlu0 %v313, 96
        %v488 = vpop.permute.xlu0 %487
        %493 = vrot.lane.b32.xlu0 %v475, 32
        %v494 = vpop.permute.xlu0 %493
        %495 = vrot.lane.b32.xlu0 %v480, 32
        %v496 = vpop.permute.xlu0 %495
        %499 = vrot.lane.b32.xlu0 %v192, 64
        %v500 = vpop.permute.xlu0 %499
        %501 = vrot.lane.b32.xlu0 %v193, 64
        %v502 = vpop.permute.xlu0 %501
        %v505 = vsel %vm318, %v486, %v494
        %v506 = vsel %vm318, %v488, %v496
        %vm507 = vcmask 523264
        %v508 = vsel %vm507, %v505, %v500
        %v509 = vsel %vm507, %v506, %v502
        %v510 = vlaneseq
        %v511 = vshrl.u32 %v510, 7
        %v512 = vsub.s32 0, %v511
        %v513 = vrot.slane %v187, %v512
        %vm514 = vcmask 654336
        %v516 = vsel %vm514, %v508, 0
        %v519 = vsel %vm514, %v509, 0
        %521 = vmatprep.subr.mxu0 0.0
        %522 = vmatpush1.msra.mxu0 0.0
        %523 = vmatprep.subr.mxu0 0.0
        %524 = vmatpush1.msra.mxu0 0.0
        %525 = vmatprep.subr.mxu0 0.0
        %526 = vmatpush1.msra.mxu0 0.0
        %527 = vmatprep.subr.mxu0 0.0
        %528 = vmatpush1.msra.mxu0 0.0
        %529 = vmatprep.subr.mxu0 0.0
        %530 = vmatpush1.msra.mxu0 0.0
        %531 = vmatprep.subr.mxu0 0.0
        %532 = vmatpush1.msra.mxu0 0.0
        %533 = vmatprep.subr.mxu0 0.0
        %534 = vmatpush1.msra.mxu0 %v175
        %535 = vmatprep.subr.mxu0 0.0
        %536 = vmatpush1.msra.mxu0 %v174
        %537 = vmatprep.subr.mxu0 0.0
        %538 = vmatpush1.msra.mxu0 %v173
        %539 = vmatprep.subr.mxu0 0.0
        %540 = vmatpush1.msra.mxu0 %v172
        %541 = vmatprep.subr.mxu0 0.0
        %542 = vmatpush1.msra.mxu0 %v171
        %543 = vmatprep.subr.mxu0 0.0
        %544 = vmatpush1.msra.mxu0 %v170
        %545 = vmatprep.subr.mxu0 0.0
        %546 = vmatpush1.msra.mxu0 %v169
        %547 = vmatprep.subr.mxu0 0.0
        %548 = vmatpush1.msra.mxu0 %v168
        %549 = vmatprep.subr.mxu0 0.0
        %550 = vmatpush1.msra.mxu0 %v167
        %551 = vmatprep.subr.mxu0 0.0
        %552 = vmatpush1.msra.mxu0 %v166
        %553 = vmatprep.subr.mxu0 0.0
        %554 = vmatpush2.msra.mxu0 0.0
        %555 = vmatprep.subr.mxu0 0.0
        %556 = vmatpush2.msra.mxu0 0.0
        %557 = vmatprep.subr.mxu0 0.0
        %558 = vmatpush2.msra.mxu0 0.0
        %559 = vmatprep.subr.mxu0 0.0
        %560 = vmatpush2.msra.mxu0 0.0
        %561 = vmatprep.subr.mxu0 0.0
        %562 = vmatpush2.msra.mxu0 0.0
        %563 = vmatprep.subr.mxu0 0.0
        %564 = vmatpush2.msra.mxu0 0.0
        %565 = vmatprep.subr.mxu0 0.0
        %566 = vmatpush2.msra.mxu0 0.0
        %567 = vmatprep.subr.mxu0 0.0
        %568 = vmatpush2.msra.mxu0 0.0
        %569 = vmatprep.subr.mxu0 0.0
        %570 = vmatpush2.msra.mxu0 0.0
        %571 = vmatprep.subr.mxu0 0.0
        %572 = vmatpush2.msra.mxu0 0.0
        %573 = vmatprep.subr.mxu0 0.0
        %574 = vmatpush2.msra.mxu0 0.0
        %575 = vmatprep.subr.mxu0 0.0
        %576 = vmatpush2.msra.mxu0 0.0
        %577 = vmatprep.subr.mxu0 0.0
        %578 = vmatpush2.msra.mxu0 0.0
        %579 = vmatprep.subr.mxu0 0.0
        %580 = vmatpush2.msra.mxu0 0.0
        %581 = vmatprep.subr.mxu0 0.0
        %582 = vmatpush2.msra.mxu0 0.0
        %583 = vmatprep.subr.mxu0 0.0
        %584 = vmatpush2.msra.mxu0 0.0
        %585 = vmatprep.mubr.f32.mxu0 0.0
        %586 = vmatmul.mubr.f32.gmra.mxu0 %v516
        %v587 = vpop.f32.mrf.mxu0
        %v588 = vadd.f32 %v513, %v587
        %v589 = vpop.f32.mrf.mxu0
        %590 = vmatprep.mubr.f32.mxu0 0.0
        %591 = vmatmul.mubr.f32.gmra.mxu0 %v519
        %v592 = vpop.f32.mrf.mxu0
        %v593 = vadd.f32 %v513, %v592
        %v594 = vpop.f32.mrf.mxu0
        %595 = vdwg.mxu0
        %v596 = vmax.f32 %v588, 0.0
        %v597 = vmax.f32 %v593, 0.0
        %v598 = vlaneseq
        %v599 = vshrl.u32 %v598, 7
        %v600 = vsub.s32 0, %v599
        %v601 = vrot.slane %v188, %v600
        %v603 = vsel %vm318, %v596, 0
        %v606 = vsel %vm318, %v597, 0
        %608 = vmatprep.subr.mxu0 0.0
        %609 = vmatpush1.msra.mxu0 0.0
        %610 = vmatprep.subr.mxu0 0.0
        %611 = vmatpush1.msra.mxu0 0.0
        %612 = vmatprep.subr.mxu0 0.0
        %613 = vmatpush1.msra.mxu0 0.0
        %614 = vmatprep.subr.mxu0 0.0
        %615 = vmatpush1.msra.mxu0 0.0
        %616 = vmatprep.subr.mxu0 0.0
        %617 = vmatpush1.msra.mxu0 0.0
        %618 = vmatprep.subr.mxu0 0.0
        %619 = vmatpush1.msra.mxu0 0.0
        %620 = vmatprep.subr.mxu0 0.0
        %621 = vmatpush1.msra.mxu0 0.0
        %622 = vmatprep.subr.mxu0 0.0
        %623 = vmatpush1.msra.mxu0 0.0
        %624 = vmatprep.subr.mxu0 0.0
        %625 = vmatpush1.msra.mxu0 0.0
        %626 = vmatprep.subr.mxu0 0.0
        %627 = vmatpush1.msra.mxu0 0.0
        %628 = vmatprep.subr.mxu0 0.0
        %629 = vmatpush1.msra.mxu0 0.0
        %630 = vmatprep.subr.mxu0 0.0
        %631 = vmatpush1.msra.mxu0 0.0
        %632 = vmatprep.subr.mxu0 0.0
        %633 = vmatpush1.msra.mxu0 %v179
        %634 = vmatprep.subr.mxu0 0.0
        %635 = vmatpush1.msra.mxu0 %v178
        %636 = vmatprep.subr.mxu0 0.0
        %637 = vmatpush1.msra.mxu0 %v177
        %638 = vmatprep.subr.mxu0 0.0
        %639 = vmatpush1.msra.mxu0 %v176
        %640 = vmatprep.subr.mxu0 0.0
        %641 = vmatpush2.msra.mxu0 0.0
        %642 = vmatprep.subr.mxu0 0.0
        %643 = vmatpush2.msra.mxu0 0.0
        %644 = vmatprep.subr.mxu0 0.0
        %645 = vmatpush2.msra.mxu0 0.0
        %646 = vmatprep.subr.mxu0 0.0
        %647 = vmatpush2.msra.mxu0 0.0
        %648 = vmatprep.subr.mxu0 0.0
        %649 = vmatpush2.msra.mxu0 0.0
        %650 = vmatprep.subr.mxu0 0.0
        %651 = vmatpush2.msra.mxu0 0.0
        %652 = vmatprep.subr.mxu0 0.0
        %653 = vmatpush2.msra.mxu0 0.0
        %654 = vmatprep.subr.mxu0 0.0
        %655 = vmatpush2.msra.mxu0 0.0
        %656 = vmatprep.subr.mxu0 0.0
        %657 = vmatpush2.msra.mxu0 0.0
        %658 = vmatprep.subr.mxu0 0.0
        %659 = vmatpush2.msra.mxu0 0.0
        %660 = vmatprep.subr.mxu0 0.0
        %661 = vmatpush2.msra.mxu0 0.0
        %662 = vmatprep.subr.mxu0 0.0
        %663 = vmatpush2.msra.mxu0 0.0
        %664 = vmatprep.subr.mxu0 0.0
        %665 = vmatpush2.msra.mxu0 0.0
        %666 = vmatprep.subr.mxu0 0.0
        %667 = vmatpush2.msra.mxu0 0.0
        %668 = vmatprep.subr.mxu0 0.0
        %669 = vmatpush2.msra.mxu0 0.0
        %670 = vmatprep.subr.mxu0 0.0
        %671 = vmatpush2.msra.mxu0 0.0
        %672 = vmatprep.mubr.f32.mxu0 0.0
        %673 = vmatmul.mubr.f32.gmra.mxu0 %v603
        %v674 = vpop.f32.mrf.mxu0
        %v675 = vadd.f32 %v601, %v674
        %v676 = vpop.f32.mrf.mxu0
        %677 = vmatprep.mubr.f32.mxu0 0.0
        %678 = vmatmul.mubr.f32.gmra.mxu0 %v606
        %v679 = vpop.f32.mrf.mxu0
        %v680 = vadd.f32 %v601, %v679
        %v681 = vpop.f32.mrf.mxu0
        %682 = vdwg.mxu0
        %v683 = vmax.f32 %v675, 0.0
        %v684 = vmax.f32 %v680, 0.0
        %v685 = vlaneseq
        %v686 = vshrl.u32 %v685, 7
        %v687 = vsub.s32 0, %v686
        %v688 = vrot.slane %v189, %v687
        %v690 = vsel %vm318, %v683, 0
        %v693 = vsel %vm318, %v684, 0
        %695 = vmatprep.subr.mxu0 0.0
        %696 = vmatpush1.msra.mxu0 0.0
        %697 = vmatprep.subr.mxu0 0.0
        %698 = vmatpush1.msra.mxu0 0.0
        %699 = vmatprep.subr.mxu0 0.0
        %700 = vmatpush1.msra.mxu0 0.0
        %701 = vmatprep.subr.mxu0 0.0
        %702 = vmatpush1.msra.mxu0 0.0
        %703 = vmatprep.subr.mxu0 0.0
        %704 = vmatpush1.msra.mxu0 0.0
        %705 = vmatprep.subr.mxu0 0.0
        %706 = vmatpush1.msra.mxu0 0.0
        %707 = vmatprep.subr.mxu0 0.0
        %708 = vmatpush1.msra.mxu0 0.0
        %709 = vmatprep.subr.mxu0 0.0
        %710 = vmatpush1.msra.mxu0 0.0
        %711 = vmatprep.subr.mxu0 0.0
        %712 = vmatpush1.msra.mxu0 0.0
        %713 = vmatprep.subr.mxu0 0.0
        %714 = vmatpush1.msra.mxu0 0.0
        %715 = vmatprep.subr.mxu0 0.0
        %716 = vmatpush1.msra.mxu0 0.0
        %717 = vmatprep.subr.mxu0 0.0
        %718 = vmatpush1.msra.mxu0 0.0
        %719 = vmatprep.subr.mxu0 0.0
        %720 = vmatpush1.msra.mxu0 %v183
        %721 = vmatprep.subr.mxu0 0.0
        %722 = vmatpush1.msra.mxu0 %v182
        %723 = vmatprep.subr.mxu0 0.0
        %724 = vmatpush1.msra.mxu0 %v181
        %725 = vmatprep.subr.mxu0 0.0
        %726 = vmatpush1.msra.mxu0 %v180
        %727 = vmatprep.subr.mxu0 0.0
        %728 = vmatpush2.msra.mxu0 0.0
        %729 = vmatprep.subr.mxu0 0.0
        %730 = vmatpush2.msra.mxu0 0.0
        %731 = vmatprep.subr.mxu0 0.0
        %732 = vmatpush2.msra.mxu0 0.0
        %733 = vmatprep.subr.mxu0 0.0
        %734 = vmatpush2.msra.mxu0 0.0
        %735 = vmatprep.subr.mxu0 0.0
        %736 = vmatpush2.msra.mxu0 0.0
        %737 = vmatprep.subr.mxu0 0.0
        %738 = vmatpush2.msra.mxu0 0.0
        %739 = vmatprep.subr.mxu0 0.0
        %740 = vmatpush2.msra.mxu0 0.0
        %741 = vmatprep.subr.mxu0 0.0
        %742 = vmatpush2.msra.mxu0 0.0
        %743 = vmatprep.subr.mxu0 0.0
        %744 = vmatpush2.msra.mxu0 0.0
        %745 = vmatprep.subr.mxu0 0.0
        %746 = vmatpush2.msra.mxu0 0.0
        %747 = vmatprep.subr.mxu0 0.0
        %748 = vmatpush2.msra.mxu0 0.0
        %749 = vmatprep.subr.mxu0 0.0
        %750 = vmatpush2.msra.mxu0 0.0
        %751 = vmatprep.subr.mxu0 0.0
        %752 = vmatpush2.msra.mxu0 0.0
        %753 = vmatprep.subr.mxu0 0.0
        %754 = vmatpush2.msra.mxu0 0.0
        %755 = vmatprep.subr.mxu0 0.0
        %756 = vmatpush2.msra.mxu0 0.0
        %757 = vmatprep.subr.mxu0 0.0
        %758 = vmatpush2.msra.mxu0 0.0
        %759 = vmatprep.mubr.f32.mxu0 0.0
        %760 = vmatmul.mubr.f32.gmra.mxu0 %v690
        %v761 = vpop.f32.mrf.mxu0
        %v762 = vadd.f32 %v688, %v761
        %v763 = vpop.f32.mrf.mxu0
        %764 = vmatprep.mubr.f32.mxu0 0.0
        %765 = vmatmul.mubr.f32.gmra.mxu0 %v693
        %v766 = vpop.f32.mrf.mxu0
        %v767 = vadd.f32 %v688, %v766
        %v768 = vpop.f32.mrf.mxu0
        %769 = vdwg.mxu0
        %770 = vst [vmem:[%s152] sm:$0xff] %v762
        %771 = vst [vmem:[%s152 + $0x8] sm:$0xff] %v767
        %s772 = sand.u32 %s72, 1
        %s773 = scalar_lea.sflag [#allocation4], %s772
        %s774 = sand.u32 %s72, 1
        %s775 = smul.addr %s774, 16
        %s776 = scalar_lea.vmem [#allocation5], %s775
        // Predicated region
        $region33: #{tpu_custom_call.1} parent=27 // pred_check
          %p777 = pneg %p82
        $region34: #{tpu_custom_call.1} parent=27 // pred_check_branch
          %779 = sbr.rel (%p777) target = $region36
        $region35: #{tpu_custom_call.1} parent=27 // pred_region
          %s780 = smul.u32 2, %s17
          %s782 = ssub.s32 256, 256
          %783 = vsyncadd %s773, %s782
          %s784 = smul.addr %s780, 128
          %s785 = scalar_lea.hbm %s2, %s784
          %s786 = sshll.u32 %s776, 4
          %s787 = int_to_ptr.vmem [resolvable:$true] %s786
          %792 = dma.vmem_to_hbm [thread:$0]  %s787, 256, %s785, %s773, 128, 128, 8
        $region36: #{tpu_custom_call.1} parent=27 // pred_fallthru
          _
      $region28: #{tpu_custom_call.1} parent=5 // pred_fallthru
        _
      %p793 = scmp.le.s32.totalorder 2, %s12
      // Predicated region
      $region37: #{tpu_custom_call.1} parent=5 // pred_check
        %p794 = pneg %p793
      $region38: #{tpu_custom_call.1} parent=5 // pred_check_branch
        %796 = sbr.rel (%p794) target = $region40
      $region39: #{tpu_custom_call.1} parent=5 // pred_region
        %s797 = ssub.s32 %s12, 2
        // Predicated region
        $region41: #{tpu_custom_call.1} parent=39 // pred_check
          %p798 = pneg %p88
        $region42: #{tpu_custom_call.1} parent=39 // pred_check_branch
          %800 = sbr.rel (%p798) target = $region44
        $region43: #{tpu_custom_call.1} parent=39 // pred_region
          %s801 = sand.u32 %s73, 1
          %s802 = scalar_lea.sflag [#allocation4], %s801
          %s803 = sand.u32 %s73, 1
          %s804 = smul.addr %s803, 16
          %s805 = scalar_lea.vmem [#allocation5], %s804
          %806 = dma.done %s802, 256
        $region44: #{tpu_custom_call.1} parent=39 // pred_fallthru
          _
      $region40: #{tpu_custom_call.1} parent=5 // pred_fallthru
        _
    $region6: #{tpu_custom_call.1} parent=1 // loop_footer
      %s16 = sadd.s32 1, %s12
    $region7: #{tpu_custom_call.1} parent=1 // loop_footer_branch
      %11 = sbr.rel target = $region3
    $region8: #{tpu_custom_call.1} parent=1 // loop_exit
      _
    %807 = vsyncpa [#allocation3], 1
    %s808 = scalar_lea.sflag [#allocation3], 1
    %809 = vsyncpa %s808, 1
    %810 = vsyncpa [#allocation4], 1
    %s811 = scalar_lea.sflag [#allocation4], 1
    %812 = vsyncpa %s811, 1

</llo_original>
